<compile_context>
chip_gen: v5e
topology: v5e:2x2
jax: 0.10.0
libtpu: 0.0.40
codegen_flags: <defaults>
</compile_context>

<pallas_src>
import functools
import math

import jax
import jax.numpy as jnp
from jax.experimental import pallas as pl
from jax.experimental.pallas import tpu as pltpu


def _vmf_body(w, th_logit, ph_logit, lk, weight_ref, mu_ref, kappa_ref):
    """Shared elementwise body: softmax weights, unit vectors, kappa."""
    # ---- softmax over components (row-wise, K on the lane axis) ----
    m = jnp.max(w, axis=-1, keepdims=True)                  # XLU reduce
    e = jnp.exp(w - m)
    denom = jnp.sum(e, axis=-1, keepdims=True)               # (TB, 1)
    inv = pl.reciprocal(denom, approx=True)                  # EUP vrcp (free slot)
    inv = inv * (2.0 - denom * inv)                          # one Newton step (~1e-6 rel)
    weight_ref[...] = (e * inv).astype(weight_ref.dtype)

    # ---- angles via the exact tanh phase-shift identity ----
    # sigmoid(x) = (1 + tanh(x/2)) / 2, hence
    #   theta = pi*sigmoid(t)  = pi/2 + u,  u = (pi/2)*tanh(t/2)
    #   phi   = 2pi*sigmoid(p) = pi   + v,  v =  pi   *tanh(p/2)
    # => sin(theta)=cos(u), cos(theta)=-sin(u), cos(phi)=-cos(v), sin(phi)=-sin(v)
    u = (0.5 * math.pi) * jnp.tanh(0.5 * th_logit)
    v = math.pi * jnp.tanh(0.5 * ph_logit)
    sin_theta = jnp.cos(u)
    cos_theta = -jnp.sin(u)
    cos_phi = -jnp.cos(v)
    sin_phi = -jnp.sin(v)

    mu_ref[0, :, :] = (sin_theta * cos_phi).astype(mu_ref.dtype)   # mu_x
    mu_ref[1, :, :] = (sin_theta * sin_phi).astype(mu_ref.dtype)   # mu_y
    mu_ref[2, :, :] = cos_theta.astype(mu_ref.dtype)               # mu_z

    # ---- concentration ----
    kappa_ref[...] = jnp.exp(lk).astype(kappa_ref.dtype)


def _vmf_kernel_fused(w_ref, tp_ref, lk_ref, weight_ref, mu_ref, kappa_ref, *, K):
    # K % 128 == 0: static slices of the (TB, 2K) block at a lane-aligned
    # boundary are zero-cost Ref views — no relayout, no wrapper HBM traffic.
    _vmf_body(w_ref[...], tp_ref[:, :K], tp_ref[:, K:], lk_ref[...],
              weight_ref, mu_ref, kappa_ref)


def _vmf_kernel_split(w_ref, th_ref, ph_ref, lk_ref, weight_ref, mu_ref, kappa_ref):
    # Fallback for K % 128 != 0: theta/phi split done in the wrapper so the
    # kernel never slices the lane axis at an unaligned boundary.
    _vmf_body(w_ref[...], th_ref[...], ph_ref[...], lk_ref[...],
              weight_ref, mu_ref, kappa_ref)


def _round_up(x, m):
    return (x + m - 1) // m * m


def _choose_tile_rows(B, K):
    # Per-(TB, K)-plane budget of 256K elems: 9 planes/tile (4 input-plane
    # equivalents + 5 output planes), double-buffered ~ 18 * TB * K * 4 B
    # (~19 MiB at K=256) — well inside every generation's VMEM once the
    # scoped limit is raised explicitly (v5e defaults to only 16 MiB).
    max_block_elems = 256 * 1024
    tb = max(8, (max_block_elems // max(K, 1)) // 8 * 8)
    # Keep at least 2 grid steps whenever B allows it so the "parallel" axis
    # can shard across v7x's 2 TensorCores and double-buffering overlaps DMA.
    half = max(8, _round_up(pl.cdiv(B, 2), 8))
    return min(tb, half)


def _vmf_forward_impl(w_logits, theta_phi, log_kappa, out_dtype=jnp.float32):
    """Returns (weight (B,K,1), mu (B,K,3), kappa (B,K,1)) matching the torch module."""
    B, K = w_logits.shape
    assert theta_phi.shape == (B, 2 * K)
    assert log_kappa.shape == (B, K)

    f32 = jnp.float32
    w_logits = w_logits.astype(f32)
    theta_phi = theta_phi.astype(f32)
    log_kappa = log_kappa.astype(f32)

    tb = _choose_tile_rows(B, K)
    grid = (pl.cdiv(B, tb),)

    row_spec = pl.BlockSpec((tb, K), lambda i: (i, 0))
    mu_spec = pl.BlockSpec((3, tb, K), lambda i: (0, i, 0))

    out_shapes = (
        jax.ShapeDtypeStruct((B, K), out_dtype),       # weight (planar)
        jax.ShapeDtypeStruct((3, B, K), out_dtype),    # mu planes (x, y, z)
        jax.ShapeDtypeStruct((B, K), out_dtype),       # kappa (planar)
    )
    out_specs = (row_spec, mu_spec, row_spec)

    cost = pl.CostEstimate(
        flops=15 * B * K,
        transcendentals=9 * B * K,
        bytes_accessed=(4 + 5) * B * K * 4,
    )
    cparams = pltpu.CompilerParams(
        dimension_semantics=("parallel",),
        vmem_limit_bytes=40 * 1024 * 1024,
    )

    if K % 128 == 0:
        # Lane-aligned K: one (B, 2K) operand, sliced inside the kernel.
        kernel = functools.partial(_vmf_kernel_fused, K=K)
        in_specs = [row_spec, pl.BlockSpec((tb, 2 * K), lambda i: (i, 0)), row_spec]
        operands = (w_logits, theta_phi, log_kappa)
    else:
        # TODO(synk): for production small-K (module default K=8) a lane-dense
        # (K, B) layout would avoid masked vst.msk stores; not implemented here.
        kernel = _vmf_kernel_split
        in_specs = [row_spec, row_spec, row_spec, row_spec]
        operands = (w_logits, theta_phi[:, :K], theta_phi[:, K:], log_kappa)

    weight_p, mu_p, kappa_p = pl.pallas_call(
        kernel,
        out_shape=out_shapes,
        grid=grid,
        in_specs=in_specs,
        out_specs=out_specs,
        compiler_params=cparams,
        cost_estimate=cost,
    )(*operands)

    # Glue (minimal): planar weight/kappa -> trailing size-1 axis is a free
    # reshape; mu needs exactly one transpose to match torch's (B, K, 3).
    weight = weight_p[..., None]
    mu = jnp.moveaxis(mu_p, 0, -1)
    kappa = kappa_p[..., None]
    return weight, mu, kappa


vmf_mixture_forward = jax.jit(_vmf_forward_impl, static_argnames=("out_dtype",))


def _reference(w_logits, theta_phi, log_kappa):
    """Pure-JAX reference mirroring the torch forward."""
    K = w_logits.shape[-1]
    weight = jax.nn.softmax(w_logits, axis=-1)[..., None]
    tp = jax.nn.sigmoid(theta_phi)
    theta = tp[:, :K] * math.pi
    phi = tp[:, K:] * 2.0 * math.pi
    mu = jnp.stack(
        (jnp.sin(theta) * jnp.cos(phi),
         jnp.sin(theta) * jnp.sin(phi),
         jnp.cos(theta)),
        axis=-1,
    )
    kappa = jnp.exp(log_kappa)[..., None]
    return weight, mu, kappa


if __name__ == "__main__":
    def run_case(batch_size, components_num, key):
        # Deterministic "parameters" mirroring nn.Parameter(torch.randn(...)).
        k1, k2, k3 = jax.random.split(key, 3)
        w_logits = jax.random.normal(k1, (batch_size, components_num), jnp.float32)
        theta_phi = jax.random.normal(
            k2, (batch_size, 2 * components_num), jnp.float32) * 3.0
        log_kappa = jax.random.normal(k3, (batch_size, components_num), jnp.float32)

        weight, mu, kappa = vmf_mixture_forward(w_logits, theta_phi, log_kappa)
        jax.block_until_ready((weight, mu, kappa))

        w_ref, mu_ref, k_ref = _reference(w_logits, theta_phi, log_kappa)
        assert weight.shape == (batch_size, components_num, 1)
        assert mu.shape == (batch_size, components_num, 3)
        assert kappa.shape == (batch_size, components_num, 1)
        # weight: approx-reciprocal + Newton keeps relative error ~1e-6.
        assert jnp.allclose(weight, w_ref, atol=1e-5, rtol=1e-4)
        # mu: exact tanh phase-shift identity -> tight tolerance everywhere.
        assert jnp.allclose(mu, mu_ref, atol=1e-5, rtol=1e-5)
        assert jnp.allclose(kappa, k_ref, atol=1e-5, rtol=1e-5)

    key = jax.random.PRNGKey(0)
    k_small, k_big = jax.random.split(key)
    run_case(2, 8, k_small)      # module-default toy shape (split path, K % 128 != 0)
    run_case(256, 128, k_big)    # lane-aligned fused path, grid of 2 tiles

    print("KERNEL_OK")
</pallas_src>

<mosaic_0001>
module attributes {stable_mosaic.version = 11 : i64} {
  func.func @_vmf_kernel_split(%arg0: i32, %arg1: memref<8x8xf32, #tpu.memory_space<vmem>>, %arg2: memref<8x8xf32, #tpu.memory_space<vmem>>, %arg3: memref<8x8xf32, #tpu.memory_space<vmem>>, %arg4: memref<8x8xf32, #tpu.memory_space<vmem>>, %arg5: memref<8x8xf32, #tpu.memory_space<vmem>>, %arg6: memref<3x8x8xf32, #tpu.memory_space<vmem>>, %arg7: memref<8x8xf32, #tpu.memory_space<vmem>>) attributes {dimension_semantics = [#tpu.dimension_semantics<parallel>], iteration_bounds = array<i64: 1>, scalar_prefetch = 0 : i64, scratch_operands = 0 : i64, tpu.core_type = #tpu.core_type<tc>, window_params = [{transform_indices = @transform_0, window_bounds = array<i64: 8, 8>}, {transform_indices = @transform_1, window_bounds = array<i64: 8, 8>}, {transform_indices = @transform_2, window_bounds = array<i64: 8, 8>}, {transform_indices = @transform_3, window_bounds = array<i64: 8, 8>}, {transform_indices = @transform_4, window_bounds = array<i64: 8, 8>}, {transform_indices = @transform_5, window_bounds = array<i64: 3, 8, 8>}, {transform_indices = @transform_6, window_bounds = array<i64: 8, 8>}]} {
    %c0 = arith.constant 0 : index
    %c0_0 = arith.constant 0 : index
    %0 = vector.load %arg1[%c0, %c0_0] : memref<8x8xf32, #tpu.memory_space<vmem>>, vector<8x8xf32>
    %c0_1 = arith.constant 0 : index
    %c0_2 = arith.constant 0 : index
    %1 = vector.load %arg2[%c0_1, %c0_2] : memref<8x8xf32, #tpu.memory_space<vmem>>, vector<8x8xf32>
    %c0_3 = arith.constant 0 : index
    %c0_4 = arith.constant 0 : index
    %2 = vector.load %arg3[%c0_3, %c0_4] : memref<8x8xf32, #tpu.memory_space<vmem>>, vector<8x8xf32>
    %c0_5 = arith.constant 0 : index
    %c0_6 = arith.constant 0 : index
    %3 = vector.load %arg4[%c0_5, %c0_6] : memref<8x8xf32, #tpu.memory_space<vmem>>, vector<8x8xf32>
    %cst = arith.constant dense<0xFF800000> : vector<8xf32>
    %4 = vector.multi_reduction <maximumf>, %0, %cst [1] : vector<8x8xf32> to vector<8xf32>
    %5 = vector.shape_cast %4 : vector<8xf32> to vector<8x1xf32>
    %6 = vector.broadcast %5 : vector<8x1xf32> to vector<8x8xf32>
    %7 = arith.subf %0, %6 : vector<8x8xf32>
    %8 = math.exp %7 : vector<8x8xf32>
    %cst_7 = arith.constant dense<0.000000e+00> : vector<8xf32>
    %9 = vector.multi_reduction <add>, %8, %cst_7 [1] : vector<8x8xf32> to vector<8xf32>
    %10 = vector.shape_cast %9 : vector<8xf32> to vector<8x1xf32>
    %11 = tpu.reciprocal %10 {approx = true} : vector<8x1xf32> -> vector<8x1xf32>
    %12 = arith.mulf %10, %11 : vector<8x1xf32>
    %cst_8 = arith.constant 2.000000e+00 : f32
    %13 = vector.broadcast %cst_8 : f32 to vector<8x1xf32>
    %14 = arith.subf %13, %12 : vector<8x1xf32>
    %15 = arith.mulf %11, %14 : vector<8x1xf32>
    %16 = vector.broadcast %15 : vector<8x1xf32> to vector<8x8xf32>
    %17 = arith.mulf %8, %16 : vector<8x8xf32>
    %c0_9 = arith.constant 0 : index
    %c0_10 = arith.constant 0 : index
    %18 = vector.load %arg5[%c0_9, %c0_10] : memref<8x8xf32, #tpu.memory_space<vmem>>, vector<8x8xf32>
    tpu.vector_store %arg5[%c0_9, %c0_10], %17 {strides = array<i32>} : memref<8x8xf32, #tpu.memory_space<vmem>>, vector<8x8xf32>,
    %cst_11 = arith.constant 5.000000e-01 : f32
    %19 = vector.broadcast %cst_11 : f32 to vector<8x8xf32>
    %20 = arith.mulf %19, %1 : vector<8x8xf32>
    %21 = math.tanh %20 : vector<8x8xf32>
    %cst_12 = arith.constant 1.57079637 : f32
    %22 = vector.broadcast %cst_12 : f32 to vector<8x8xf32>
    %23 = arith.mulf %22, %21 : vector<8x8xf32>
    %cst_13 = arith.constant 5.000000e-01 : f32
    %24 = vector.broadcast %cst_13 : f32 to vector<8x8xf32>
    %25 = arith.mulf %24, %2 : vector<8x8xf32>
    %26 = math.tanh %25 : vector<8x8xf32>
    %cst_14 = arith.constant 3.14159274 : f32
    %27 = vector.broadcast %cst_14 : f32 to vector<8x8xf32>
    %28 = arith.mulf %27, %26 : vector<8x8xf32>
    %29 = math.cos %23 : vector<8x8xf32>
    %30 = math.sin %23 : vector<8x8xf32>
    %cst_15 = arith.constant 0.000000e+00 : f32
    %31 = vector.broadcast %cst_15 : f32 to vector<8x8xf32>
    %32 = arith.subf %31, %30 : vector<8x8xf32>
    %33 = math.cos %28 : vector<8x8xf32>
    %cst_16 = arith.constant 0.000000e+00 : f32
    %34 = vector.broadcast %cst_16 : f32 to vector<8x8xf32>
    %35 = arith.subf %34, %33 : vector<8x8xf32>
    %36 = math.sin %28 : vector<8x8xf32>
    %cst_17 = arith.constant 0.000000e+00 : f32
    %37 = vector.broadcast %cst_17 : f32 to vector<8x8xf32>
    %38 = arith.subf %37, %36 : vector<8x8xf32>
    %39 = arith.mulf %29, %35 : vector<8x8xf32>
    %c0_18 = arith.constant 0 : index
    %c0_19 = arith.constant 0 : index
    %c0_20 = arith.constant 0 : index
    %40 = vector.load %arg6[%c0_18, %c0_19, %c0_20] : memref<3x8x8xf32, #tpu.memory_space<vmem>>, vector<1x8x8xf32>
    %41 = vector.shape_cast %40 : vector<1x8x8xf32> to vector<8x8xf32>
    %42 = vector.shape_cast %39 : vector<8x8xf32> to vector<1x8x8xf32>
    tpu.vector_store %arg6[%c0_18, %c0_19, %c0_20], %42 {strides = array<i32>} : memref<3x8x8xf32, #tpu.memory_space<vmem>>, vector<1x8x8xf32>,
    %43 = arith.mulf %29, %38 : vector<8x8xf32>
    %c1 = arith.constant 1 : index
    %c0_21 = arith.constant 0 : index
    %c0_22 = arith.constant 0 : index
    %44 = vector.load %arg6[%c1, %c0_21, %c0_22] : memref<3x8x8xf32, #tpu.memory_space<vmem>>, vector<1x8x8xf32>
    %45 = vector.shape_cast %44 : vector<1x8x8xf32> to vector<8x8xf32>
    %46 = vector.shape_cast %43 : vector<8x8xf32> to vector<1x8x8xf32>
    tpu.vector_store %arg6[%c1, %c0_21, %c0_22], %46 {strides = array<i32>} : memref<3x8x8xf32, #tpu.memory_space<vmem>>, vector<1x8x8xf32>,
    %c2 = arith.constant 2 : index
    %c0_23 = arith.constant 0 : index
    %c0_24 = arith.constant 0 : index
    %47 = vector.load %arg6[%c2, %c0_23, %c0_24] : memref<3x8x8xf32, #tpu.memory_space<vmem>>, vector<1x8x8xf32>
    %48 = vector.shape_cast %47 : vector<1x8x8xf32> to vector<8x8xf32>
    %49 = vector.shape_cast %32 : vector<8x8xf32> to vector<1x8x8xf32>
    tpu.vector_store %arg6[%c2, %c0_23, %c0_24], %49 {strides = array<i32>} : memref<3x8x8xf32, #tpu.memory_space<vmem>>, vector<1x8x8xf32>,
    %50 = math.exp %3 : vector<8x8xf32>
    %c0_25 = arith.constant 0 : index
    %c0_26 = arith.constant 0 : index
    %51 = vector.load %arg7[%c0_25, %c0_26] : memref<8x8xf32, #tpu.memory_space<vmem>>, vector<8x8xf32>
    tpu.vector_store %arg7[%c0_25, %c0_26], %50 {strides = array<i32>} : memref<8x8xf32, #tpu.memory_space<vmem>>, vector<8x8xf32>,
    return
  }
  func.func @transform_0(%arg0: i32) -> (i32, i32) {
    %c0_i32 = arith.constant 0 : i32
    %c0_i32_0 = arith.constant 0 : i32
    return %arg0, %c0_i32 : i32, i32
  }
  func.func @transform_1(%arg0: i32) -> (i32, i32) {
    %c0_i32 = arith.constant 0 : i32
    %c0_i32_0 = arith.constant 0 : i32
    return %arg0, %c0_i32 : i32, i32
  }
  func.func @transform_2(%arg0: i32) -> (i32, i32) {
    %c0_i32 = arith.constant 0 : i32
    %c0_i32_0 = arith.constant 0 : i32
    return %arg0, %c0_i32 : i32, i32
  }
  func.func @transform_3(%arg0: i32) -> (i32, i32) {
    %c0_i32 = arith.constant 0 : i32
    %c0_i32_0 = arith.constant 0 : i32
    return %arg0, %c0_i32 : i32, i32
  }
  func.func @transform_4(%arg0: i32) -> (i32, i32) {
    %c0_i32 = arith.constant 0 : i32
    %c0_i32_0 = arith.constant 0 : i32
    return %arg0, %c0_i32 : i32, i32
  }
  func.func @transform_5(%arg0: i32) -> (i32, i32, i32) {
    %c0_i32 = arith.constant 0 : i32
    %c0_i32_0 = arith.constant 0 : i32
    %c0_i32_1 = arith.constant 0 : i32
    return %c0_i32, %arg0, %c0_i32_0 : i32, i32, i32
  }
  func.func @transform_6(%arg0: i32) -> (i32, i32) {
    %c0_i32 = arith.constant 0 : i32
    %c0_i32_0 = arith.constant 0 : i32
    return %arg0, %c0_i32 : i32, i32
  }
}

</mosaic_0001>

<llo_original>
// kernel: _vmf_forward_impl.1
$region0: #{_vmf_forward_impl.1}
  #allocation0 [shape = 'u32[]', space=smem, size = 0x4, offset = 0x4, fixed_abs, tag = 'smem constant byte address 0x4 - core index']
  #allocation1 [shape = 'u32[72,128]{1,0:T(1,128)}', space=vmem, size = 0x9000, scoped, tag = 'internal scratch']
  #allocation7 [shape = 's32[]', space=sflag, size = 0x4, offset = 0, fixed_abs, tag = 'sflag constant byte address 0x0 - dummy sync flag']
  %s0 = inlined_call_operand.vmem [shape: f32[2,8], index: 0, kind: input, shape index: {}]
  %s1 = inlined_call_operand.vmem [shape: f32[2,8], index: 1, kind: input, shape index: {}]
  %s2 = inlined_call_operand.vmem [shape: f32[2,8], index: 2, kind: input, shape index: {}]
  %s3 = inlined_call_operand.vmem [shape: f32[2,8], index: 3, kind: input, shape index: {}]
  %s4 = inlined_call_operand.hbm [shape: f32[2,8], index: 4, kind: output, shape index: {0}]
  %s5 = inlined_call_operand.hbm [shape: f32[3,2,8], index: 5, kind: output, shape index: {1}]
  %s6 = inlined_call_operand.hbm [shape: f32[2,8], index: 6, kind: output, shape index: {2}]
  %7 = xla_tuple %s4, %s5, %s6
  %s8 = sld [smem:[#allocation0]]
  $region42: #{_vmf_forward_impl.1} parent=0
    _
  %s10 = ssub.s32 1, %s8
  %s11 = scalar_select 0, %s10, %s8
  $region1: #{_vmf_forward_impl.1} parent=0
    #allocation2 [shape = 'u8[4096]{0}', space=vmem, size = 0x1000, scoped, tag = 'output window, operand 0, single buffered']
    #allocation3 [shape = 's32[1]{0}', space=sflag, size = 0x4, scoped, tag = 'scoped memory for _vmf_forward_impl.1']
    #allocation4 [shape = 'u8[12288]{0}', space=vmem, size = 0x3000, scoped, tag = 'output window, operand 1, single buffered']
    #allocation5 [shape = 's32[1]{0}', space=sflag, size = 0x4, scoped, tag = 'scoped memory for _vmf_forward_impl.1']
    #allocation6 [shape = 'u8[4096]{0}', space=vmem, size = 0x1000, scoped, tag = 'output window, operand 2, single buffered']
    %12 = vsyncpa [#allocation3], 0
    %13 = vsyncpa [#allocation5], 0
    // Predicated region
    $region2: #{_vmf_forward_impl.1} parent=1 // pred_check
      _
    $region3: #{_vmf_forward_impl.1} parent=1 // pred_check_branch
      %15 = sbr.rel (0) target = $region5
    $region4: #{_vmf_forward_impl.1} parent=1 // pred_region
      _
    $region5: #{_vmf_forward_impl.1} parent=1 // pred_fallthru
      _
    // Predicated region
    $region6: #{_vmf_forward_impl.1} parent=1 // pred_check
      _
    $region7: #{_vmf_forward_impl.1} parent=1 // pred_check_branch
      %17 = sbr.rel (0) target = $region9
    $region8: #{_vmf_forward_impl.1} parent=1 // pred_region
      _
    $region9: #{_vmf_forward_impl.1} parent=1 // pred_fallthru
      _
    // Predicated region
    $region10: #{_vmf_forward_impl.1} parent=1 // pred_check
      _
    $region11: #{_vmf_forward_impl.1} parent=1 // pred_check_branch
      %19 = sbr.rel (0) target = $region13
    $region12: #{_vmf_forward_impl.1} parent=1 // pred_region
      _
    $region13: #{_vmf_forward_impl.1} parent=1 // pred_fallthru
      _
    // Predicated region
    $region14: #{_vmf_forward_impl.1} parent=1 // pred_check
      _
    $region15: #{_vmf_forward_impl.1} parent=1 // pred_check_branch
      %21 = sbr.rel (0) target = $region17
    $region16: #{_vmf_forward_impl.1} parent=1 // pred_region
      _
    $region17: #{_vmf_forward_impl.1} parent=1 // pred_fallthru
      _
    %v22 = vld [vmem:[%s0] sm:$0xff]
    %v23 = vld [vmem:[%s1] sm:$0xff]
    %v24 = vld [vmem:[%s2] sm:$0xff]
    %v25 = vld [vmem:[%s3] sm:$0xff]
    %vm26 = vcmask 64512
    %v27 = vsel %vm26, %v22, -inf
    %28 = vmax.xlane.f32.xlu0 %v27
    %v29 = vpop.xlane.xlu0 %28
    %v30 = vsub.f32 %v22, %v29
    %v31 = vmul.f32 %v30, 1.442695
    %v32 = vpow.pop %v31
    %v33 = vsel %vm26, %v32, 0.0
    %34 = vadd.xlane.f32.xlu0 %v33
    %v35 = vpop.xlane.xlu0 %34
    %v36 = vrcp.pop %v35
    %v37 = vmul.f32 %v35, %v36
    %v38 = vsub.f32 2.0, %v37
    %v39 = vmul.f32 %v36, %v38
    %v40 = vmul.f32 %v32, %v39
    %41 = vst.msk [vmem:[#allocation2] sm:$0xff] %vm26, %v40
    %v42 = vmul.f32 %v23, 0.5
    %v43 = vtanh.pop %v42
    %v44 = vmul.f32 %v43, 1.5707964
    %v45 = vmul.f32 %v24, 0.5
    %v46 = vtanh.pop %v45
    %v47 = vmul.f32 %v46, 3.1415927
    %v48 = vand.u32 2147483647, %v44
    %vm49 = vcmp.le.f32.partialorder %v48, 0.7853982
    %vm50 = vcmp.lt.s32.totalorder %v44, 0
    %v51 = vand.u32 %v44, 2139095040
    %v52 = vshrl.u32 %v51, 23
    %v53 = vsub.s32 %v52, 127
    %v54 = vand.u32 2147483647, %v44
    %v55 = vand.u32 %v54, 8388607
    %v56 = vor.u32 %v55, 8388608
    %v57 = vsub.s32 0, %v56
    %v58 = vadd.s32 %v53, 1
    %vm59 = vcmp.gt.s32.totalorder %v58, 0
    %v60 = vsel %vm59, %v58, 0
    %v61 = vshrl.u32 %v60, 5
    %v62 = vand.u32 %v60, 31
    %v63 = vsub.s32 32, %v62
    %v64 = vshrl.u32 683565275, %v63
    %v65 = vshll.u32 683565275, %v62
    %v66 = vshrl.u32 2475754826, %v63
    %v67 = vor.u32 %v65, %v66
    %v68 = vshll.u32 2475754826, %v62
    %v69 = vshrl.u32 2131351028, %v63
    %v70 = vor.u32 %v68, %v69
    %v71 = vshll.u32 2131351028, %v62
    %v72 = vshrl.u32 2102212464, %v63
    %v73 = vor.u32 %v71, %v72
    %v74 = vshll.u32 2102212464, %v62
    %v75 = vshrl.u32 920167782, %v63
    %v76 = vor.u32 %v74, %v75
    %v77 = vshll.u32 920167782, %v62
    %v78 = vshrl.u32 1326507024, %v63
    %v79 = vor.u32 %v77, %v78
    %vm80 = vcmp.lt.s32.totalorder %v61, 1
    %vm81 = vcmp.lt.s32.totalorder %v61, 2
    %vm82 = vcmp.lt.s32.totalorder %v61, 3
    %vm83 = vcmp.lt.s32.totalorder %v61, 4
    %v84 = vsel %vm80, %v64, %v67
    %v85 = vsel %vm83, %v73, 2102212464
    %v86 = vsel %vm82, %v70, %v85
    %v87 = vsel %vm81, %v84, %v86
    %v88 = vsel %vm80, %v67, %v70
    %v89 = vsel %vm83, %v76, 920167782
    %v90 = vsel %vm82, %v73, %v89
    %v91 = vsel %vm81, %v88, %v90
    %v92 = vsel %vm80, %v70, %v73
    %v93 = vsel %vm83, %v79, 1326507024
    %v94 = vsel %vm82, %v76, %v93
    %v95 = vsel %vm81, %v92, %v94
    %v96 = vshll.u32 %v56, 8
    %v97 = vand.u32 %v96, 65535
    %v98 = vshrl.u32 %v96, 16
    %v99 = vand.u32 %v95, 65535
    %v100 = vshrl.u32 %v95, 16
    %v101 = vmul.u32 %v97, %v99
    %v102 = vmul.u32 %v97, %v100
    %v103 = vmul.u32 %v98, %v99
    %v104 = vmul.u32 %v98, %v100
    %v105 = vshll.u32 %v102, 16
    %v106 = vshrl.u32 %v102, 16
    %v107 = vshll.u32 %v103, 16
    %v108 = vshrl.u32 %v103, 16
    %vm109 = vc.u32 %v101, %v105
    %v110 = vsel %vm109, 1, 0
    %v111 = vadd.s32 %v101, %v105
    %v112 = vadd.s32 %v104, %v110
    %vm113 = vc.u32 %v111, %v107
    %v114 = vsel %vm113, 1, 0
    %v115 = vadd.s32 %v111, %v107
    %v116 = vadd.s32 %v112, %v114
    %v117 = vadd.s32 %v116, %v106
    %v118 = vadd.s32 %v117, %v108
    %v119 = vand.u32 %v96, 65535
    %v120 = vshrl.u32 %v96, 16
    %v121 = vand.u32 %v91, 65535
    %v122 = vshrl.u32 %v91, 16
    %v123 = vmul.u32 %v119, %v121
    %v124 = vmul.u32 %v119, %v122
    %v125 = vmul.u32 %v120, %v121
    %v126 = vmul.u32 %v120, %v122
    %v127 = vshll.u32 %v124, 16
    %v128 = vshrl.u32 %v124, 16
    %v129 = vshll.u32 %v125, 16
    %v130 = vshrl.u32 %v125, 16
    %vm131 = vc.u32 %v123, %v127
    %v132 = vsel %vm131, 1, 0
    %v133 = vadd.s32 %v123, %v127
    %v134 = vadd.s32 %v126, %v132
    %vm135 = vc.u32 %v133, %v129
    %v136 = vsel %vm135, 1, 0
    %v137 = vadd.s32 %v133, %v129
    %v138 = vadd.s32 %v134, %v136
    %v139 = vadd.s32 %v138, %v128
    %v140 = vadd.s32 %v139, %v130
    %v141 = vmul.u32 %v96, %v87
    %v142 = vadd.s32 %v118, %v137
    %vm143 = vc.u32 %v118, %v137
    %v144 = vadd.s32 %v140, 1
    %v145 = vsel %vm143, %v144, %v140
    %v146 = vadd.s32 %v141, %v145
    %v147 = vadd.s32 %v146, 536870912
    %v148 = vshrl.u32 %v147, 30
    %v149 = vshll.u32 %v148, 30
    %v150 = vsub.s32 %v146, %v149
    %vm151 = vcmp.lt.s32.totalorder %v150, 0
    %v152 = vsub.s32 0, %v150
    %v153 = vsel %vm151, %v152, %v150
    %v154 = vclz %v153
    %v155 = vsub.s32 %v154, 2
    %vm156 = vcmp.gt.s32.totalorder 0, %v155
    %v157 = vsel %vm156, 0, %v155
    %v158 = vsub.s32 32, %v157
    %v159 = vshll.u32 %v150, %v157
    %v160 = vshrl.u32 %v142, %v158
    %v161 = vor.u32 %v159, %v160
    %v162 = vsub.s32 4294967266, %v157
    %v163 = vadd.s32 %v162, 127
    %v164 = vshll.u32 %v163, 23
    %v165 = vor.u32 4788187, %v164
    %v166 = vand.u32 2147483647, %v165
    %v168 = vcvt.s32.f32 %v161
    %v169 = vmul.f32 %v168, %v166
    %v170 = vxor.u32 %v169, 2147483648
    %v171 = vsel %vm50, %v170, %v169
    %v172 = vsub.s32 4, %v148
    %v173 = vsel %vm50, %v172, %v148
    %v174 = vsel %vm49, %v44, %v171
    %v175 = vsel %vm49, 0, %v173
    %v176 = vmul.f32 %v174, %v174
    %v177 = vmul.f32 %v176, -0.001358992
    %v178 = vadd.f32 %v177, 0.041655596
    %v179 = vmul.f32 %v176, %v178
    %v180 = vadd.f32 %v179, -0.4999988
    %v181 = vmul.f32 %v176, %v180
    %v182 = vadd.f32 1.0, %v181
    %v183 = vmul.f32 %v174, %v174
    %v184 = vmul.f32 %v183, -0.00019511016
    %v185 = vadd.f32 %v184, 0.008332121
    %v186 = vmul.f32 %v183, %v185
    %v187 = vadd.f32 %v186, -0.16666654
    %v188 = vmul.f32 %v183, %v187
    %v189 = vadd.f32 %v188, 1.0
    %v190 = vmul.f32 %v189, %v174
    %vm191 = vweird.f32 %v44
    %v192 = vand.u32 %v175, 3
    %vm193 = vcmp.lt.s32.totalorder %v192, 2
    %vm194 = vcmp.eq.s32.totalorder %v192, 0
    %v195 = vxor.u32 %v190, 2147483648
    %v196 = vsel %vm194, %v182, %v195
    %vm197 = vcmp.eq.s32.totalorder %v192, 2
    %v198 = vxor.u32 %v182, 2147483648
    %v199 = vsel %vm197, %v198, %v190
    %v200 = vsel %vm193, %v196, %v199
    %v201 = vsel %vm191, nan, %v200
    %v202 = vand.u32 2147483647, %v44
    %vm203 = vcmp.le.f32.partialorder %v202, 0.7853982
    %vm204 = vcmp.lt.s32.totalorder %v44, 0
    %v205 = vand.u32 %v44, 2139095040
    %v206 = vshrl.u32 %v205, 23
    %v207 = vsub.s32 %v206, 127
    %v208 = vand.u32 2147483647, %v44
    %v209 = vand.u32 %v208, 8388607
    %v210 = vor.u32 %v209, 8388608
    %v211 = vsub.s32 0, %v210
    %v212 = vadd.s32 %v207, 1
    %vm213 = vcmp.gt.s32.totalorder %v212, 0
    %v214 = vsel %vm213, %v212, 0
    %v215 = vshrl.u32 %v214, 5
    %v216 = vand.u32 %v214, 31
    %v217 = vsub.s32 32, %v216
    %v218 = vshrl.u32 683565275, %v217
    %v219 = vshll.u32 683565275, %v216
    %v220 = vshrl.u32 2475754826, %v217
    %v221 = vor.u32 %v219, %v220
    %v222 = vshll.u32 2475754826, %v216
    %v223 = vshrl.u32 2131351028, %v217
    %v224 = vor.u32 %v222, %v223
    %v225 = vshll.u32 2131351028, %v216
    %v226 = vshrl.u32 2102212464, %v217
    %v227 = vor.u32 %v225, %v226
    %v228 = vshll.u32 2102212464, %v216
    %v229 = vshrl.u32 920167782, %v217
    %v230 = vor.u32 %v228, %v229
    %v231 = vshll.u32 920167782, %v216
    %v232 = vshrl.u32 1326507024, %v217
    %v233 = vor.u32 %v231, %v232
    %vm234 = vcmp.lt.s32.totalorder %v215, 1
    %vm235 = vcmp.lt.s32.totalorder %v215, 2
    %vm236 = vcmp.lt.s32.totalorder %v215, 3
    %vm237 = vcmp.lt.s32.totalorder %v215, 4
    %v238 = vsel %vm234, %v218, %v221
    %v239 = vsel %vm237, %v227, 2102212464
    %v240 = vsel %vm236, %v224, %v239
    %v241 = vsel %vm235, %v238, %v240
    %v242 = vsel %vm234, %v221, %v224
    %v243 = vsel %vm237, %v230, 920167782
    %v244 = vsel %vm236, %v227, %v243
    %v245 = vsel %vm235, %v242, %v244
    %v246 = vsel %vm234, %v224, %v227
    %v247 = vsel %vm237, %v233, 1326507024
    %v248 = vsel %vm236, %v230, %v247
    %v249 = vsel %vm235, %v246, %v248
    %v250 = vshll.u32 %v210, 8
    %v251 = vand.u32 %v250, 65535
    %v252 = vshrl.u32 %v250, 16
    %v253 = vand.u32 %v249, 65535
    %v254 = vshrl.u32 %v249, 16
    %v255 = vmul.u32 %v251, %v253
    %v256 = vmul.u32 %v251, %v254
    %v257 = vmul.u32 %v252, %v253
    %v258 = vmul.u32 %v252, %v254
    %v259 = vshll.u32 %v256, 16
    %v260 = vshrl.u32 %v256, 16
    %v261 = vshll.u32 %v257, 16
    %v262 = vshrl.u32 %v257, 16
    %vm263 = vc.u32 %v255, %v259
    %v264 = vsel %vm263, 1, 0
    %v265 = vadd.s32 %v255, %v259
    %v266 = vadd.s32 %v258, %v264
    %vm267 = vc.u32 %v265, %v261
    %v268 = vsel %vm267, 1, 0
    %v269 = vadd.s32 %v265, %v261
    %v270 = vadd.s32 %v266, %v268
    %v271 = vadd.s32 %v270, %v260
    %v272 = vadd.s32 %v271, %v262
    %v273 = vand.u32 %v250, 65535
    %v274 = vshrl.u32 %v250, 16
    %v275 = vand.u32 %v245, 65535
    %v276 = vshrl.u32 %v245, 16
    %v277 = vmul.u32 %v273, %v275
    %v278 = vmul.u32 %v273, %v276
    %v279 = vmul.u32 %v274, %v275
    %v280 = vmul.u32 %v274, %v276
    %v281 = vshll.u32 %v278, 16
    %v282 = vshrl.u32 %v278, 16
    %v283 = vshll.u32 %v279, 16
    %v284 = vshrl.u32 %v279, 16
    %vm285 = vc.u32 %v277, %v281
    %v286 = vsel %vm285, 1, 0
    %v287 = vadd.s32 %v277, %v281
    %v288 = vadd.s32 %v280, %v286
    %vm289 = vc.u32 %v287, %v283
    %v290 = vsel %vm289, 1, 0
    %v291 = vadd.s32 %v287, %v283
    %v292 = vadd.s32 %v288, %v290
    %v293 = vadd.s32 %v292, %v282
    %v294 = vadd.s32 %v293, %v284
    %v295 = vmul.u32 %v250, %v241
    %v296 = vadd.s32 %v272, %v291
    %vm297 = vc.u32 %v272, %v291
    %v298 = vadd.s32 %v294, 1
    %v299 = vsel %vm297, %v298, %v294
    %v300 = vadd.s32 %v295, %v299
    %v301 = vadd.s32 %v300, 536870912
    %v302 = vshrl.u32 %v301, 30
    %v303 = vshll.u32 %v302, 30
    %v304 = vsub.s32 %v300, %v303
    %vm305 = vcmp.lt.s32.totalorder %v304, 0
    %v306 = vsub.s32 0, %v304
    %v307 = vsel %vm305, %v306, %v304
    %v308 = vclz %v307
    %v309 = vsub.s32 %v308, 2
    %vm310 = vcmp.gt.s32.totalorder 0, %v309
    %v311 = vsel %vm310, 0, %v309
    %v312 = vsub.s32 32, %v311
    %v313 = vshll.u32 %v304, %v311
    %v314 = vshrl.u32 %v296, %v312
    %v315 = vor.u32 %v313, %v314
    %v316 = vsub.s32 4294967266, %v311
    %v317 = vadd.s32 %v316, 127
    %v318 = vshll.u32 %v317, 23
    %v319 = vor.u32 4788187, %v318
    %v320 = vand.u32 2147483647, %v319
    %v322 = vcvt.s32.f32 %v315
    %v323 = vmul.f32 %v322, %v320
    %v324 = vxor.u32 %v323, 2147483648
    %v325 = vsel %vm204, %v324, %v323
    %v326 = vsub.s32 4, %v302
    %v327 = vsel %vm204, %v326, %v302
    %v328 = vsel %vm203, %v44, %v325
    %v329 = vsel %vm203, 0, %v327
    %v330 = vmul.f32 %v328, %v328
    %v331 = vmul.f32 %v330, -0.001358992
    %v332 = vadd.f32 %v331, 0.041655596
    %v333 = vmul.f32 %v330, %v332
    %v334 = vadd.f32 %v333, -0.4999988
    %v335 = vmul.f32 %v330, %v334
    %v336 = vadd.f32 1.0, %v335
    %v337 = vmul.f32 %v328, %v328
    %v338 = vmul.f32 %v337, -0.00019511016
    %v339 = vadd.f32 %v338, 0.008332121
    %v340 = vmul.f32 %v337, %v339
    %v341 = vadd.f32 %v340, -0.16666654
    %v342 = vmul.f32 %v337, %v341
    %v343 = vadd.f32 %v342, 1.0
    %v344 = vmul.f32 %v343, %v328
    %vm345 = vweird.f32 %v44
    %v346 = vadd.s32 %v329, 3
    %v347 = vand.u32 %v346, 3
    %vm348 = vcmp.lt.s32.totalorder %v347, 2
    %vm349 = vcmp.eq.s32.totalorder %v347, 0
    %v350 = vxor.u32 %v344, 2147483648
    %v351 = vsel %vm349, %v336, %v350
    %vm352 = vcmp.eq.s32.totalorder %v347, 2
    %v353 = vxor.u32 %v336, 2147483648
    %v354 = vsel %vm352, %v353, %v344
    %v355 = vsel %vm348, %v351, %v354
    %v356 = vsel %vm345, nan, %v355
    %v357 = vsub.f32 0.0, %v356
    %v358 = vand.u32 2147483647, %v47
    %vm359 = vcmp.le.f32.partialorder %v358, 0.7853982
    %vm360 = vcmp.lt.s32.totalorder %v47, 0
    %v361 = vand.u32 %v47, 2139095040
    %v362 = vshrl.u32 %v361, 23
    %v363 = vsub.s32 %v362, 127
    %v364 = vand.u32 2147483647, %v47
    %v365 = vand.u32 %v364, 8388607
    %v366 = vor.u32 %v365, 8388608
    %v367 = vsub.s32 0, %v366
    %v368 = vadd.s32 %v363, 1
    %vm369 = vcmp.gt.s32.totalorder %v368, 0
    %v370 = vsel %vm369, %v368, 0
    %v371 = vshrl.u32 %v370, 5
    %v372 = vand.u32 %v370, 31
    %v373 = vsub.s32 32, %v372
    %v374 = vshrl.u32 683565275, %v373
    %v375 = vshll.u32 683565275, %v372
    %v376 = vshrl.u32 2475754826, %v373
    %v377 = vor.u32 %v375, %v376
    %v378 = vshll.u32 2475754826, %v372
    %v379 = vshrl.u32 2131351028, %v373
    %v380 = vor.u32 %v378, %v379
    %v381 = vshll.u32 2131351028, %v372
    %v382 = vshrl.u32 2102212464, %v373
    %v383 = vor.u32 %v381, %v382
    %v384 = vshll.u32 2102212464, %v372
    %v385 = vshrl.u32 920167782, %v373
    %v386 = vor.u32 %v384, %v385
    %v387 = vshll.u32 920167782, %v372
    %v388 = vshrl.u32 1326507024, %v373
    %v389 = vor.u32 %v387, %v388
    %vm390 = vcmp.lt.s32.totalorder %v371, 1
    %vm391 = vcmp.lt.s32.totalorder %v371, 2
    %vm392 = vcmp.lt.s32.totalorder %v371, 3
    %vm393 = vcmp.lt.s32.totalorder %v371, 4
    %v394 = vsel %vm390, %v374, %v377
    %v395 = vsel %vm393, %v383, 2102212464
    %v396 = vsel %vm392, %v380, %v395
    %v397 = vsel %vm391, %v394, %v396
    %v398 = vsel %vm390, %v377, %v380
    %v399 = vsel %vm393, %v386, 920167782
    %v400 = vsel %vm392, %v383, %v399
    %v401 = vsel %vm391, %v398, %v400
    %v402 = vsel %vm390, %v380, %v383
    %v403 = vsel %vm393, %v389, 1326507024
    %v404 = vsel %vm392, %v386, %v403
    %v405 = vsel %vm391, %v402, %v404
    %v406 = vshll.u32 %v366, 8
    %v407 = vand.u32 %v406, 65535
    %v408 = vshrl.u32 %v406, 16
    %v409 = vand.u32 %v405, 65535
    %v410 = vshrl.u32 %v405, 16
    %v411 = vmul.u32 %v407, %v409
    %v412 = vmul.u32 %v407, %v410
    %v413 = vmul.u32 %v408, %v409
    %v414 = vmul.u32 %v408, %v410
    %v415 = vshll.u32 %v412, 16
    %v416 = vshrl.u32 %v412, 16
    %v417 = vshll.u32 %v413, 16
    %v418 = vshrl.u32 %v413, 16
    %vm419 = vc.u32 %v411, %v415
    %v420 = vsel %vm419, 1, 0
    %v421 = vadd.s32 %v411, %v415
    %v422 = vadd.s32 %v414, %v420
    %vm423 = vc.u32 %v421, %v417
    %v424 = vsel %vm423, 1, 0
    %v425 = vadd.s32 %v421, %v417
    %v426 = vadd.s32 %v422, %v424
    %v427 = vadd.s32 %v426, %v416
    %v428 = vadd.s32 %v427, %v418
    %v429 = vand.u32 %v406, 65535
    %v430 = vshrl.u32 %v406, 16
    %v431 = vand.u32 %v401, 65535
    %v432 = vshrl.u32 %v401, 16
    %v433 = vmul.u32 %v429, %v431
    %v434 = vmul.u32 %v429, %v432
    %v435 = vmul.u32 %v430, %v431
    %v436 = vmul.u32 %v430, %v432
    %v437 = vshll.u32 %v434, 16
    %v438 = vshrl.u32 %v434, 16
    %v439 = vshll.u32 %v435, 16
    %v440 = vshrl.u32 %v435, 16
    %vm441 = vc.u32 %v433, %v437
    %v442 = vsel %vm441, 1, 0
    %v443 = vadd.s32 %v433, %v437
    %v444 = vadd.s32 %v436, %v442
    %vm445 = vc.u32 %v443, %v439
    %v446 = vsel %vm445, 1, 0
    %v447 = vadd.s32 %v443, %v439
    %v448 = vadd.s32 %v444, %v446
    %v449 = vadd.s32 %v448, %v438
    %v450 = vadd.s32 %v449, %v440
    %v451 = vmul.u32 %v406, %v397
    %v452 = vadd.s32 %v428, %v447
    %vm453 = vc.u32 %v428, %v447
    %v454 = vadd.s32 %v450, 1
    %v455 = vsel %vm453, %v454, %v450
    %v456 = vadd.s32 %v451, %v455
    %v457 = vadd.s32 %v456, 536870912
    %v458 = vshrl.u32 %v457, 30
    %v459 = vshll.u32 %v458, 30
    %v460 = vsub.s32 %v456, %v459
    %vm461 = vcmp.lt.s32.totalorder %v460, 0
    %v462 = vsub.s32 0, %v460
    %v463 = vsel %vm461, %v462, %v460
    %v464 = vclz %v463
    %v465 = vsub.s32 %v464, 2
    %vm466 = vcmp.gt.s32.totalorder 0, %v465
    %v467 = vsel %vm466, 0, %v465
    %v468 = vsub.s32 32, %v467
    %v469 = vshll.u32 %v460, %v467
    %v470 = vshrl.u32 %v452, %v468
    %v471 = vor.u32 %v469, %v470
    %v472 = vsub.s32 4294967266, %v467
    %v473 = vadd.s32 %v472, 127
    %v474 = vshll.u32 %v473, 23
    %v475 = vor.u32 4788187, %v474
    %v476 = vand.u32 2147483647, %v475
    %v478 = vcvt.s32.f32 %v471
    %v479 = vmul.f32 %v478, %v476
    %v480 = vxor.u32 %v479, 2147483648
    %v481 = vsel %vm360, %v480, %v479
    %v482 = vsub.s32 4, %v458
    %v483 = vsel %vm360, %v482, %v458
    %v484 = vsel %vm359, %v47, %v481
    %v485 = vsel %vm359, 0, %v483
    %v486 = vmul.f32 %v484, %v484
    %v487 = vmul.f32 %v486, -0.001358992
    %v488 = vadd.f32 %v487, 0.041655596
    %v489 = vmul.f32 %v486, %v488
    %v490 = vadd.f32 %v489, -0.4999988
    %v491 = vmul.f32 %v486, %v490
    %v492 = vadd.f32 1.0, %v491
    %v493 = vmul.f32 %v484, %v484
    %v494 = vmul.f32 %v493, -0.00019511016
    %v495 = vadd.f32 %v494, 0.008332121
    %v496 = vmul.f32 %v493, %v495
    %v497 = vadd.f32 %v496, -0.16666654
    %v498 = vmul.f32 %v493, %v497
    %v499 = vadd.f32 %v498, 1.0
    %v500 = vmul.f32 %v499, %v484
    %vm501 = vweird.f32 %v47
    %v502 = vand.u32 %v485, 3
    %vm503 = vcmp.lt.s32.totalorder %v502, 2
    %vm504 = vcmp.eq.s32.totalorder %v502, 0
    %v505 = vxor.u32 %v500, 2147483648
    %v506 = vsel %vm504, %v492, %v505
    %vm507 = vcmp.eq.s32.totalorder %v502, 2
    %v508 = vxor.u32 %v492, 2147483648
    %v509 = vsel %vm507, %v508, %v500
    %v510 = vsel %vm503, %v506, %v509
    %v511 = vsel %vm501, nan, %v510
    %v512 = vsub.f32 0.0, %v511
    %v513 = vand.u32 2147483647, %v47
    %vm514 = vcmp.le.f32.partialorder %v513, 0.7853982
    %vm515 = vcmp.lt.s32.totalorder %v47, 0
    %v516 = vand.u32 %v47, 2139095040
    %v517 = vshrl.u32 %v516, 23
    %v518 = vsub.s32 %v517, 127
    %v519 = vand.u32 2147483647, %v47
    %v520 = vand.u32 %v519, 8388607
    %v521 = vor.u32 %v520, 8388608
    %v522 = vsub.s32 0, %v521
    %v523 = vadd.s32 %v518, 1
    %vm524 = vcmp.gt.s32.totalorder %v523, 0
    %v525 = vsel %vm524, %v523, 0
    %v526 = vshrl.u32 %v525, 5
    %v527 = vand.u32 %v525, 31
    %v528 = vsub.s32 32, %v527
    %v529 = vshrl.u32 683565275, %v528
    %v530 = vshll.u32 683565275, %v527
    %v531 = vshrl.u32 2475754826, %v528
    %v532 = vor.u32 %v530, %v531
    %v533 = vshll.u32 2475754826, %v527
    %v534 = vshrl.u32 2131351028, %v528
    %v535 = vor.u32 %v533, %v534
    %v536 = vshll.u32 2131351028, %v527
    %v537 = vshrl.u32 2102212464, %v528
    %v538 = vor.u32 %v536, %v537
    %v539 = vshll.u32 2102212464, %v527
    %v540 = vshrl.u32 920167782, %v528
    %v541 = vor.u32 %v539, %v540
    %v542 = vshll.u32 920167782, %v527
    %v543 = vshrl.u32 1326507024, %v528
    %v544 = vor.u32 %v542, %v543
    %vm545 = vcmp.lt.s32.totalorder %v526, 1
    %vm546 = vcmp.lt.s32.totalorder %v526, 2
    %vm547 = vcmp.lt.s32.totalorder %v526, 3
    %vm548 = vcmp.lt.s32.totalorder %v526, 4
    %v549 = vsel %vm545, %v529, %v532
    %v550 = vsel %vm548, %v538, 2102212464
    %v551 = vsel %vm547, %v535, %v550
    %v552 = vsel %vm546, %v549, %v551
    %v553 = vsel %vm545, %v532, %v535
    %v554 = vsel %vm548, %v541, 920167782
    %v555 = vsel %vm547, %v538, %v554
    %v556 = vsel %vm546, %v553, %v555
    %v557 = vsel %vm545, %v535, %v538
    %v558 = vsel %vm548, %v544, 1326507024
    %v559 = vsel %vm547, %v541, %v558
    %v560 = vsel %vm546, %v557, %v559
    %v561 = vshll.u32 %v521, 8
    %v562 = vand.u32 %v561, 65535
    %v563 = vshrl.u32 %v561, 16
    %v564 = vand.u32 %v560, 65535
    %v565 = vshrl.u32 %v560, 16
    %v566 = vmul.u32 %v562, %v564
    %v567 = vmul.u32 %v562, %v565
    %v568 = vmul.u32 %v563, %v564
    %v569 = vmul.u32 %v563, %v565
    %v570 = vshll.u32 %v567, 16
    %v571 = vshrl.u32 %v567, 16
    %v572 = vshll.u32 %v568, 16
    %v573 = vshrl.u32 %v568, 16
    %vm574 = vc.u32 %v566, %v570
    %v575 = vsel %vm574, 1, 0
    %v576 = vadd.s32 %v566, %v570
    %v577 = vadd.s32 %v569, %v575
    %vm578 = vc.u32 %v576, %v572
    %v579 = vsel %vm578, 1, 0
    %v580 = vadd.s32 %v576, %v572
    %v581 = vadd.s32 %v577, %v579
    %v582 = vadd.s32 %v581, %v571
    %v583 = vadd.s32 %v582, %v573
    %v584 = vand.u32 %v561, 65535
    %v585 = vshrl.u32 %v561, 16
    %v586 = vand.u32 %v556, 65535
    %v587 = vshrl.u32 %v556, 16
    %v588 = vmul.u32 %v584, %v586
    %v589 = vmul.u32 %v584, %v587
    %v590 = vmul.u32 %v585, %v586
    %v591 = vmul.u32 %v585, %v587
    %v592 = vshll.u32 %v589, 16
    %v593 = vshrl.u32 %v589, 16
    %v594 = vshll.u32 %v590, 16
    %v595 = vshrl.u32 %v590, 16
    %vm596 = vc.u32 %v588, %v592
    %v597 = vsel %vm596, 1, 0
    %v598 = vadd.s32 %v588, %v592
    %v599 = vadd.s32 %v591, %v597
    %vm600 = vc.u32 %v598, %v594
    %v601 = vsel %vm600, 1, 0
    %v602 = vadd.s32 %v598, %v594
    %v603 = vadd.s32 %v599, %v601
    %v604 = vadd.s32 %v603, %v593
    %v605 = vadd.s32 %v604, %v595
    %v606 = vmul.u32 %v561, %v552
    %v607 = vadd.s32 %v583, %v602
    %vm608 = vc.u32 %v583, %v602
    %v609 = vadd.s32 %v605, 1
    %v610 = vsel %vm608, %v609, %v605
    %v611 = vadd.s32 %v606, %v610
    %v612 = vadd.s32 %v611, 536870912
    %v613 = vshrl.u32 %v612, 30
    %v614 = vshll.u32 %v613, 30
    %v615 = vsub.s32 %v611, %v614
    %vm616 = vcmp.lt.s32.totalorder %v615, 0
    %v617 = vsub.s32 0, %v615
    %v618 = vsel %vm616, %v617, %v615
    %v619 = vclz %v618
    %v620 = vsub.s32 %v619, 2
    %vm621 = vcmp.gt.s32.totalorder 0, %v620
    %v622 = vsel %vm621, 0, %v620
    %v623 = vsub.s32 32, %v622
    %v624 = vshll.u32 %v615, %v622
    %v625 = vshrl.u32 %v607, %v623
    %v626 = vor.u32 %v624, %v625
    %v627 = vsub.s32 4294967266, %v622
    %v628 = vadd.s32 %v627, 127
    %v629 = vshll.u32 %v628, 23
    %v630 = vor.u32 4788187, %v629
    %v631 = vand.u32 2147483647, %v630
    %v633 = vcvt.s32.f32 %v626
    %v634 = vmul.f32 %v633, %v631
    %v635 = vxor.u32 %v634, 2147483648
    %v636 = vsel %vm515, %v635, %v634
    %v637 = vsub.s32 4, %v613
    %v638 = vsel %vm515, %v637, %v613
    %v639 = vsel %vm514, %v47, %v636
    %v640 = vsel %vm514, 0, %v638
    %v641 = vmul.f32 %v639, %v639
    %v642 = vmul.f32 %v641, -0.001358992
    %v643 = vadd.f32 %v642, 0.041655596
    %v644 = vmul.f32 %v641, %v643
    %v645 = vadd.f32 %v644, -0.4999988
    %v646 = vmul.f32 %v641, %v645
    %v647 = vadd.f32 1.0, %v646
    %v648 = vmul.f32 %v639, %v639
    %v649 = vmul.f32 %v648, -0.00019511016
    %v650 = vadd.f32 %v649, 0.008332121
    %v651 = vmul.f32 %v648, %v650
    %v652 = vadd.f32 %v651, -0.16666654
    %v653 = vmul.f32 %v648, %v652
    %v654 = vadd.f32 %v653, 1.0
    %v655 = vmul.f32 %v654, %v639
    %vm656 = vweird.f32 %v47
    %v657 = vadd.s32 %v640, 3
    %v658 = vand.u32 %v657, 3
    %vm659 = vcmp.lt.s32.totalorder %v658, 2
    %vm660 = vcmp.eq.s32.totalorder %v658, 0
    %v661 = vxor.u32 %v655, 2147483648
    %v662 = vsel %vm660, %v647, %v661
    %vm663 = vcmp.eq.s32.totalorder %v658, 2
    %v664 = vxor.u32 %v647, 2147483648
    %v665 = vsel %vm663, %v664, %v655
    %v666 = vsel %vm659, %v662, %v665
    %v667 = vsel %vm656, nan, %v666
    %v668 = vsub.f32 0.0, %v667
    %v669 = vmul.f32 %v201, %v512
    %670 = vst.msk [vmem:[#allocation4] sm:$0xff] %vm26, %v669
    %v671 = vmul.f32 %v201, %v668
    %s672 = scalar_lea.vmem [#allocation4], 8
    %673 = vst.msk [vmem:[%s672] sm:$0xff] %vm26, %v671
    %s674 = scalar_lea.vmem [#allocation4], 16
    %675 = vst.msk [vmem:[%s674] sm:$0xff] %vm26, %v357
    %v676 = vmul.f32 %v25, 1.442695
    %v677 = vpow.pop %v676
    %678 = vst.msk [vmem:[#allocation6] sm:$0xff] %vm26, %v677
    // Predicated region
    $region18: #{_vmf_forward_impl.1} parent=1 // pred_check
      _
    $region19: #{_vmf_forward_impl.1} parent=1 // pred_check_branch
      %680 = sbr.rel (0) target = $region21
    $region20: #{_vmf_forward_impl.1} parent=1 // pred_region
      %682 = vsyncadd [#allocation3], 96
      %s683 = sshll.u32 [#allocation2], 4
      %s684 = int_to_ptr.vmem [resolvable:$true] %s683
      %s685 = sshll.u32 %s4, 4
      %s686 = int_to_ptr.hbm [resolvable:$true] %s685
      %691 = dma.vmem_to_hbm [thread:$0]  %s684, 32, %s686, [#allocation3], 32, 32, 2
    $region21: #{_vmf_forward_impl.1} parent=1 // pred_fallthru
      _
    // Predicated region
    $region22: #{_vmf_forward_impl.1} parent=1 // pred_check
      _
    $region23: #{_vmf_forward_impl.1} parent=1 // pred_check_branch
      %693 = sbr.rel (0) target = $region25
    $region24: #{_vmf_forward_impl.1} parent=1 // pred_region
      #allocation8 [shape = 'u32[6]{0}', space=smem, size = 0x18, scoped, tag = 'DMA stride descriptor']
      %695 = vsyncadd [#allocation5], 288
      %s697 = sshll.u32 1, 14
      %s698 = sxor.u32 4294967295, %s697
      %s701 = sshll.u32 7, 18
      %s702 = sxor.u32 4294967295, %s701
      %s703 = sand.u32 0, %s702
      %s705 = sor.u32 %s703, 0
      %s706 = sshll.u32 [#allocation4], 4
      %s707 = int_to_ptr.vmem [resolvable:$true] %s706
      %s708 = sshll.u32 %s5, 4
      %s709 = int_to_ptr.hbm [resolvable:$true] %s708
      %715 = sst [smem:[#allocation8]] 128
      %s716 = scalar_lea.smem [#allocation8], 1
      %717 = sst [smem:[%s716]] 32
      %s718 = scalar_lea.smem [#allocation8], 2
      %719 = sst [smem:[%s718]] 1
      %s720 = scalar_lea.smem [#allocation8], 3
      %721 = sst [smem:[%s720]] 32
      %s722 = scalar_lea.smem [#allocation8], 4
      %723 = sst [smem:[%s722]] 32
      %s724 = scalar_lea.smem [#allocation8], 5
      %725 = sst [smem:[%s724]] 2
      %727 = dma.general %s707, 96, %s709, [#allocation5], [#allocation7], [#allocation8], %s705, 0
    $region25: #{_vmf_forward_impl.1} parent=1 // pred_fallthru
      _
    // Predicated region
    $region26: #{_vmf_forward_impl.1} parent=1 // pred_check
      _
    $region27: #{_vmf_forward_impl.1} parent=1 // pred_check_branch
      %729 = sbr.rel (0) target = $region29
    $region28: #{_vmf_forward_impl.1} parent=1 // pred_region
      %731 = vsyncadd [#allocation5], 96
      %s732 = sshll.u32 [#allocation6], 4
      %s733 = int_to_ptr.vmem [resolvable:$true] %s732
      %s734 = sshll.u32 %s6, 4
      %s735 = int_to_ptr.hbm [resolvable:$true] %s734
      %740 = dma.vmem_to_hbm [thread:$0]  %s733, 32, %s735, [#allocation5], 32, 32, 2
    $region29: #{_vmf_forward_impl.1} parent=1 // pred_fallthru
      _
    // Predicated region
    $region30: #{_vmf_forward_impl.1} parent=1 // pred_check
      _
    $region31: #{_vmf_forward_impl.1} parent=1 // pred_check_branch
      %742 = sbr.rel (0) target = $region33
    $region32: #{_vmf_forward_impl.1} parent=1 // pred_region
      %744 = dma.done [#allocation3], 128
    $region33: #{_vmf_forward_impl.1} parent=1 // pred_fallthru
      _
    // Predicated region
    $region34: #{_vmf_forward_impl.1} parent=1 // pred_check
      _
    $region35: #{_vmf_forward_impl.1} parent=1 // pred_check_branch
      %746 = sbr.rel (0) target = $region37
    $region36: #{_vmf_forward_impl.1} parent=1 // pred_region
      %748 = dma.done [#allocation5], 384
    $region37: #{_vmf_forward_impl.1} parent=1 // pred_fallthru
      _
    // Predicated region
    $region38: #{_vmf_forward_impl.1} parent=1 // pred_check
      _
    $region39: #{_vmf_forward_impl.1} parent=1 // pred_check_branch
      %750 = sbr.rel (0) target = $region41
    $region40: #{_vmf_forward_impl.1} parent=1 // pred_region
      %752 = dma.done [#allocation5], 128
    $region41: #{_vmf_forward_impl.1} parent=1 // pred_fallthru
      _
    %753 = vsyncpa [#allocation3], 1
    %754 = vsyncpa [#allocation5], 1

</llo_original>
